<compile_context>
chip_gen: v5e
topology: v5e:2x2
jax: 0.10.0
libtpu: 0.0.40
codegen_flags: <defaults>
</compile_context>

<pallas_src>
from functools import partial

import numpy as np
import jax
import jax.numpy as jnp
from jax.experimental import pallas as pl
from jax.experimental.pallas import tpu as pltpu


# ----------------------------------------------------------------------------
# CQT kernel construction (plain numpy "parameter setup"; deterministic).
# Mirrors create_cqt_kernels() with window='hann' (scipy periodic hann).
# ----------------------------------------------------------------------------
def _hann_periodic(N):
    n = np.arange(N)
    return 0.5 - 0.5 * np.cos(2.0 * np.pi * n / N)


def create_cqt_kernels(Q, fs, fmin, n_bins=84, bins_per_octave=12, norm=1,
                       topbin_check=True, gamma=0):
    freqs = fmin * 2.0 ** (np.arange(n_bins) / float(bins_per_octave))
    if np.max(freqs) > fs / 2 and topbin_check:
        raise ValueError("The top bin exceeds the Nyquist frequency")
    alpha = 2.0 ** (1.0 / bins_per_octave) - 1.0
    lengths = np.ceil(Q * fs / (freqs + gamma / alpha))
    max_len = int(max(lengths))
    fftLen = int(2 ** np.ceil(np.log2(max_len)))
    tempKernel = np.zeros((int(n_bins), int(fftLen)), dtype=np.complex64)
    for k in range(int(n_bins)):
        freq = freqs[k]
        l = lengths[k]
        if l % 2 == 1:
            start = int(np.ceil(fftLen / 2.0 - l / 2.0)) - 1
        else:
            start = int(np.ceil(fftLen / 2.0 - l / 2.0))
        window = _hann_periodic(int(l))
        sig = window * np.exp(np.arange(-l // 2, l // 2) * 1j * 2 * np.pi * freq / fs) / l
        if norm:
            tempKernel[k, start:start + int(l)] = sig / np.linalg.norm(sig, norm)
        else:
            tempKernel[k, start:start + int(l)] = sig
    return tempKernel, fftLen, lengths.astype(np.float32), freqs


# ----------------------------------------------------------------------------
# Pallas kernel: strided conv1d (real & imag fused) as Q accumulated matmuls.
# Layout: time-in-lanes -> lane-dense unmasked stores, output already (B,NR,T).
# ----------------------------------------------------------------------------
def _make_cqt_kernel(n_rows_half, n_shifts, tm, hw):
    width = tm + hw

    def kernel(xm_ref, halo_ref, w_ref, o_ref):
        xm = xm_ref[0]                                       # (hop, TM)
        # tap group q = 0 needs no shift
        acc = jnp.dot(w_ref[0], xm, preferred_element_type=jnp.float32)  # (2*NR, TM)
        if n_shifts > 1:
            # (hop, TM + HW): both pieces are multiples of 128 lanes -> aligned.
            win = jnp.concatenate([xm, halo_ref[0]], axis=1)
            for q in range(1, n_shifts):
                # roll puts column q at column 0 (XLU lane rotate, overlaps MXU);
                # the [:, :TM] slice is lane-aligned.  No wrap-around is read
                # because t + q < TM + HW for t < TM, q < HW.
                shifted = pltpu.roll(win, shift=width - q, axis=1)[:, :tm]
                acc = acc + jnp.dot(w_ref[q], shifted,
                                    preferred_element_type=jnp.float32)
        real = acc[:n_rows_half]                             # sublane-aligned split
        imag = acc[n_rows_half:]
        o_ref[0] = jnp.sqrt(real * real + imag * imag)       # (NR, TM) unmasked store

    return kernel


@partial(jax.jit,
         static_argnames=("hop", "NB", "NR", "Q", "HW", "TM", "nT", "T", "pad"))
def _cqt_forward(x, w, *, hop, NB, NR, Q, HW, TM, nT, T, pad):
    """x: (B, L) float32 signal; w: (Q, 2*NR, hop) fused weights."""
    B = x.shape[0]
    x = jnp.pad(x, ((0, 0), (pad, pad)), mode="reflect")
    Lp = x.shape[1]

    # hop-strided "time-in-lanes" view: x2t[b, r, s] = x_padded[b, s*hop + r].
    n_cols = nT * TM + HW                 # main tiles + trailing halo columns
    need = n_cols * hop
    x = jnp.pad(x, ((0, 0), (0, need - Lp)))     # only zero-weight taps / dead
    x2t = x.reshape(B, n_cols, hop).transpose(0, 2, 1)        # (B, hop, n_cols)

    t_padded = nT * TM
    kernel = _make_cqt_kernel(NR, Q, TM, HW)
    out = pl.pallas_call(
        kernel,
        out_shape=jax.ShapeDtypeStruct((B, NR, t_padded), jnp.float32),
        grid_spec=pltpu.PrefetchScalarGridSpec(
            num_scalar_prefetch=0,
            grid=(B, nT),
            in_specs=[
                # main hop-strided block: hop sublanes x TM time-lanes
                pl.BlockSpec((1, hop, TM), lambda b, i: (b, 0, i)),
                # 128-lane halo = first columns of the next tile (same array)
                pl.BlockSpec((1, hop, HW),
                             lambda b, i: (b, 0, i * (TM // HW) + (TM // HW))),
                # fused per-tap-group weights [real*s ; -imag*s], VMEM resident
                pl.BlockSpec((Q, 2 * NR, hop), lambda b, i: (0, 0, 0)),
            ],
            out_specs=pl.BlockSpec((1, NR, TM), lambda b, i: (b, 0, i)),
        ),
        compiler_params=pltpu.CompilerParams(
            dimension_semantics=("parallel", "parallel")),
    )(x2t, x2t, w)

    # already in PyTorch's (B, n_bins, T) layout; drop bin/time padding
    return out[:, :NB, :T]


class CQT:
    """JAX/Pallas implementation of the PyTorch CQT module (Magnitude output)."""

    def __init__(self, sr=2000, hop_length=32, fmin=250.0, n_bins=12,
                 bins_per_octave=6, filter_scale=1, norm=1,
                 center=True, pad_mode="reflect", output_format="Magnitude"):
        assert center and pad_mode == "reflect" and output_format == "Magnitude"
        self.hop_length = int(hop_length)
        self.center = center
        Qf = float(filter_scale) / (2 ** (1 / bins_per_octave) - 1)
        kern, self.kernel_width, lengths, self.frequencies = create_cqt_kernels(
            Qf, sr, fmin, n_bins, bins_per_octave, norm)
        self.n_bins = int(n_bins)
        self.lengths = lengths
        self.kern_np = kern

        K = self.kernel_width
        hop = self.hop_length
        # Number of hop-sized tap groups; kernel length padded with zero taps so
        # the frame matrix decomposes into lane-shifted hop-strided rows.
        self.n_shifts = max(1, -(-K // hop))                 # Q = ceil(K / hop)
        self.k_padded = self.n_shifts * hop
        # Sublane-aligned half height of the fused [real ; -imag] weight stack.
        self.n_rows_half = max(8, ((self.n_bins + 7) // 8) * 8)
        # Halo width (lanes) read from the next tile: >= Q, multiple of 128.
        self.halo_width = ((self.n_shifts + 127) // 128) * 128

        # Fold librosa sqrt(lengths) and the imag sign into the weights, split
        # per tap group q: w[q, n, r] multiplies x[(t + q) * hop + r].
        s = np.sqrt(lengths.astype(np.float64))[:, None]
        NR = self.n_rows_half
        wflat = np.zeros((2 * NR, self.k_padded), dtype=np.float64)
        wflat[:self.n_bins, :K] = kern.real.astype(np.float64) * s
        wflat[NR:NR + self.n_bins, :K] = -kern.imag.astype(np.float64) * s
        wq = wflat.reshape(2 * NR, self.n_shifts, hop).transpose(1, 0, 2)
        self.w_fused = jnp.asarray(wq.astype(np.float32))    # (Q, 2*NR, hop)

    def __call__(self, x):
        # broadcast_dim: accept (L,), (B, L) or (B, 1, L)
        if x.ndim == 1:
            x = x[None, :]
        elif x.ndim == 3:
            x = x[:, 0, :]
        elif x.ndim != 2:
            raise ValueError("Only (len,), (batch, len) or (batch, 1, len) supported")
        x = x.astype(jnp.float32)
        B, L = x.shape
        K = self.kernel_width
        hop = self.hop_length
        Q = self.n_shifts
        HW = self.halo_width

        pad = K // 2
        Lp = L + 2 * pad
        T = (Lp - K) // hop + 1

        # Time tile: big tiles amortize the ~0.35us/step grid overhead, clamped
        # to the real amount of work so short signals don't compute padding,
        # and shrunk so tiny inputs still give the pipeline (and both v7x
        # TensorCores) enough grid steps.
        TM = min(4096, ((T + 127) // 128) * 128)
        while TM > 128 and B * (-(-T // TM)) < 16:
            TM //= 2
        TM = max(((TM + HW - 1) // HW) * HW, HW)   # halo offset must stay block-aligned
        nT = -(-T // TM)

        return _cqt_forward(x, self.w_fused, hop=hop, NB=self.n_bins,
                            NR=self.n_rows_half, Q=Q, HW=HW, TM=TM, nT=nT,
                            T=T, pad=pad)


# ----------------------------------------------------------------------------
# Independent numpy reference (direct strided conv1d) for a correctness check.
# ----------------------------------------------------------------------------
def _reference_cqt(x_np, kern, lengths, hop, K):
    B, L = x_np.shape
    pad = K // 2
    xp = np.pad(x_np.astype(np.float64), ((0, 0), (pad, pad)), mode="reflect")
    T = (xp.shape[1] - K) // hop + 1
    n_bins = kern.shape[0]
    out = np.zeros((B, n_bins, T))
    wr = kern.real.astype(np.float64)   # (n_bins, K)
    wi = kern.imag.astype(np.float64)
    s = np.sqrt(lengths.astype(np.float64))
    for b in range(B):
        for t in range(T):
            frame = xp[b, t * hop:t * hop + K]
            real = (wr @ frame) * s
            imag = -(wi @ frame) * s
            out[b, :, t] = np.sqrt(real ** 2 + imag ** 2)
    return out


if __name__ == "__main__":
    # Small synthetic CQT config: sr=2000, fmin=250 Hz, 12 bins @ 6 bins/octave
    # -> kernel_width (fftLen) = 128, hop = 32.
    cqt = CQT(sr=2000, hop_length=32, fmin=250.0, n_bins=12, bins_per_octave=6)

    key = jax.random.PRNGKey(0)

    # Case 1: (num_audio, len_audio)
    x = jax.random.normal(key, (2, 512), dtype=jnp.float32)
    y = jax.block_until_ready(cqt(x))
    y_ref = _reference_cqt(np.asarray(x), cqt.kern_np, cqt.lengths,
                           cqt.hop_length, cqt.kernel_width)
    assert y.shape == y_ref.shape, (y.shape, y_ref.shape)
    np.testing.assert_allclose(np.asarray(y), y_ref, rtol=2e-3, atol=1e-5)

    # Case 2: (num_audio, 1, len_audio) broadcast path, longer signal
    x2 = jax.random.normal(jax.random.PRNGKey(1), (1, 1, 2048), dtype=jnp.float32)
    y2 = jax.block_until_ready(cqt(x2))
    y2_ref = _reference_cqt(np.asarray(x2)[:, 0, :], cqt.kern_np, cqt.lengths,
                            cqt.hop_length, cqt.kernel_width)
    assert y2.shape == y2_ref.shape, (y2.shape, y2_ref.shape)
    np.testing.assert_allclose(np.asarray(y2), y2_ref, rtol=2e-3, atol=1e-5)

    print("KERNEL_OK")
</pallas_src>

<mosaic_0001>
module attributes {stable_mosaic.version = 11 : i64} {
  func.func @kernel(%arg0: i32, %arg1: i32, %arg2: memref<1x32x128xf32, #tpu.memory_space<vmem>>, %arg3: memref<1x32x128xf32, #tpu.memory_space<vmem>>, %arg4: memref<4x32x32xf32, #tpu.memory_space<vmem>>, %arg5: memref<1x16x128xf32, #tpu.memory_space<vmem>>) attributes {dimension_semantics = [#tpu.dimension_semantics<parallel>, #tpu.dimension_semantics<parallel>], iteration_bounds = array<i64: 2, 1>, scalar_prefetch = 0 : i64, scratch_operands = 0 : i64, tpu.core_type = #tpu.core_type<tc>, window_params = [{transform_indices = @transform_0, window_bounds = array<i64: 1, 32, 128>}, {transform_indices = @transform_1, window_bounds = array<i64: 1, 32, 128>}, {pipeline_mode = #tpu.pipeline_mode<synchronous>, transform_indices = @transform_2, window_bounds = array<i64: 4, 32, 32>}, {transform_indices = @transform_3, window_bounds = array<i64: 1, 16, 128>}]} {
    %c0 = arith.constant 0 : index
    %c0_0 = arith.constant 0 : index
    %c0_1 = arith.constant 0 : index
    %0 = vector.load %arg2[%c0, %c0_0, %c0_1] : memref<1x32x128xf32, #tpu.memory_space<vmem>>, vector<1x32x128xf32>
    %1 = vector.shape_cast %0 : vector<1x32x128xf32> to vector<32x128xf32>
    %c0_2 = arith.constant 0 : index
    %c0_3 = arith.constant 0 : index
    %c0_4 = arith.constant 0 : index
    %2 = vector.load %arg4[%c0_2, %c0_3, %c0_4] : memref<4x32x32xf32, #tpu.memory_space<vmem>>, vector<1x32x32xf32>
    %3 = vector.shape_cast %2 : vector<1x32x32xf32> to vector<32x32xf32>
    %cst = arith.constant dense<0.000000e+00> : vector<32x128xf32>
    %4 = tpu.matmul %3, %1, %cst {dimension_numbers = #tpu.dot_dimension_numbers<[1], [0], [0], [1], [0, 0, 1, 1], [], []>} : vector<32x32xf32>, vector<32x128xf32>, vector<32x128xf32> -> vector<32x128xf32>
    %c0_5 = arith.constant 0 : index
    %c0_6 = arith.constant 0 : index
    %c0_7 = arith.constant 0 : index
    %5 = vector.load %arg3[%c0_5, %c0_6, %c0_7] : memref<1x32x128xf32, #tpu.memory_space<vmem>>, vector<1x32x128xf32>
    %6 = vector.shape_cast %5 : vector<1x32x128xf32> to vector<32x128xf32>
    %7 = tpu.concatenate %1, %6 in 1 : vector<32x128xf32>, vector<32x128xf32> -> vector<32x256xf32>
    %c255_i32 = arith.constant 255 : i32
    %8 = tpu.dynamic_rotate %7 by %c255_i32 dim 1 : vector<32x256xf32>, i32 -> vector<32x256xf32>
    %9 = vector.extract_strided_slice %8 {offsets = [0, 0], sizes = [32, 128], strides = [1, 1]} : vector<32x256xf32> to vector<32x128xf32>
    %c1 = arith.constant 1 : index
    %c0_8 = arith.constant 0 : index
    %c0_9 = arith.constant 0 : index
    %10 = vector.load %arg4[%c1, %c0_8, %c0_9] : memref<4x32x32xf32, #tpu.memory_space<vmem>>, vector<1x32x32xf32>
    %11 = vector.shape_cast %10 : vector<1x32x32xf32> to vector<32x32xf32>
    %cst_10 = arith.constant dense<0.000000e+00> : vector<32x128xf32>
    %12 = tpu.matmul %11, %9, %cst_10 {dimension_numbers = #tpu.dot_dimension_numbers<[1], [0], [0], [1], [0, 0, 1, 1], [], []>} : vector<32x32xf32>, vector<32x128xf32>, vector<32x128xf32> -> vector<32x128xf32>
    %13 = arith.addf %4, %12 : vector<32x128xf32>
    %c254_i32 = arith.constant 254 : i32
    %14 = tpu.dynamic_rotate %7 by %c254_i32 dim 1 : vector<32x256xf32>, i32 -> vector<32x256xf32>
    %15 = vector.extract_strided_slice %14 {offsets = [0, 0], sizes = [32, 128], strides = [1, 1]} : vector<32x256xf32> to vector<32x128xf32>
    %c2 = arith.constant 2 : index
    %c0_11 = arith.constant 0 : index
    %c0_12 = arith.constant 0 : index
    %16 = vector.load %arg4[%c2, %c0_11, %c0_12] : memref<4x32x32xf32, #tpu.memory_space<vmem>>, vector<1x32x32xf32>
    %17 = vector.shape_cast %16 : vector<1x32x32xf32> to vector<32x32xf32>
    %cst_13 = arith.constant dense<0.000000e+00> : vector<32x128xf32>
    %18 = tpu.matmul %17, %15, %cst_13 {dimension_numbers = #tpu.dot_dimension_numbers<[1], [0], [0], [1], [0, 0, 1, 1], [], []>} : vector<32x32xf32>, vector<32x128xf32>, vector<32x128xf32> -> vector<32x128xf32>
    %19 = arith.addf %13, %18 : vector<32x128xf32>
    %c253_i32 = arith.constant 253 : i32
    %20 = tpu.dynamic_rotate %7 by %c253_i32 dim 1 : vector<32x256xf32>, i32 -> vector<32x256xf32>
    %21 = vector.extract_strided_slice %20 {offsets = [0, 0], sizes = [32, 128], strides = [1, 1]} : vector<32x256xf32> to vector<32x128xf32>
    %c3 = arith.constant 3 : index
    %c0_14 = arith.constant 0 : index
    %c0_15 = arith.constant 0 : index
    %22 = vector.load %arg4[%c3, %c0_14, %c0_15] : memref<4x32x32xf32, #tpu.memory_space<vmem>>, vector<1x32x32xf32>
    %23 = vector.shape_cast %22 : vector<1x32x32xf32> to vector<32x32xf32>
    %cst_16 = arith.constant dense<0.000000e+00> : vector<32x128xf32>
    %24 = tpu.matmul %23, %21, %cst_16 {dimension_numbers = #tpu.dot_dimension_numbers<[1], [0], [0], [1], [0, 0, 1, 1], [], []>} : vector<32x32xf32>, vector<32x128xf32>, vector<32x128xf32> -> vector<32x128xf32>
    %25 = arith.addf %19, %24 : vector<32x128xf32>
    %26 = vector.extract_strided_slice %25 {offsets = [0, 0], sizes = [16, 128], strides = [1, 1]} : vector<32x128xf32> to vector<16x128xf32>
    %27 = vector.extract_strided_slice %25 {offsets = [16, 0], sizes = [16, 128], strides = [1, 1]} : vector<32x128xf32> to vector<16x128xf32>
    %28 = arith.mulf %26, %26 : vector<16x128xf32>
    %29 = arith.mulf %27, %27 : vector<16x128xf32>
    %30 = arith.addf %28, %29 : vector<16x128xf32>
    %31 = math.sqrt %30 : vector<16x128xf32>
    %c0_17 = arith.constant 0 : index
    %c0_18 = arith.constant 0 : index
    %c0_19 = arith.constant 0 : index
    %32 = vector.load %arg5[%c0_17, %c0_18, %c0_19] : memref<1x16x128xf32, #tpu.memory_space<vmem>>, vector<1x16x128xf32>
    %33 = vector.shape_cast %32 : vector<1x16x128xf32> to vector<16x128xf32>
    %34 = vector.shape_cast %31 : vector<16x128xf32> to vector<1x16x128xf32>
    tpu.vector_store %arg5[%c0_17, %c0_18, %c0_19], %34 {strides = array<i32>} : memref<1x16x128xf32, #tpu.memory_space<vmem>>, vector<1x16x128xf32>,
    return
  }
  func.func @transform_0(%arg0: i32, %arg1: i32) -> (i32, i32, i32) {
    %c0_i32 = arith.constant 0 : i32
    %c0_i32_0 = arith.constant 0 : i32
    return %arg0, %c0_i32, %arg1 : i32, i32, i32
  }
  func.func @transform_1(%arg0: i32, %arg1: i32) -> (i32, i32, i32) {
    %c1_i32 = arith.constant 1 : i32
    %0 = arith.muli %arg1, %c1_i32 : i32
    %c1_i32_0 = arith.constant 1 : i32
    %1 = arith.addi %0, %c1_i32_0 : i32
    %c0_i32 = arith.constant 0 : i32
    %c0_i32_1 = arith.constant 0 : i32
    return %arg0, %c0_i32, %1 : i32, i32, i32
  }
  func.func @transform_2(%arg0: i32, %arg1: i32) -> (i32, i32, i32) {
    %c0_i32 = arith.constant 0 : i32
    %c0_i32_0 = arith.constant 0 : i32
    %c0_i32_1 = arith.constant 0 : i32
    %c0_i32_2 = arith.constant 0 : i32
    return %c0_i32, %c0_i32_0, %c0_i32_1 : i32, i32, i32
  }
  func.func @transform_3(%arg0: i32, %arg1: i32) -> (i32, i32, i32) {
    %c0_i32 = arith.constant 0 : i32
    %c0_i32_0 = arith.constant 0 : i32
    return %arg0, %c0_i32, %arg1 : i32, i32, i32
  }
}

</mosaic_0001>

<llo_original>
// kernel: _cqt_forward.1
$region0: #{_cqt_forward.1}
  #allocation0 [shape = 'u32[]', space=smem, size = 0x4, offset = 0x4, fixed_abs, tag = 'smem constant byte address 0x4 - core index']
  #allocation1 [shape = 'u32[72,128]{1,0:T(1,128)}', space=vmem, size = 0x9000, scoped, tag = 'internal scratch']
  %s0 = inlined_call_operand.vmem [shape: f32[2,32,256], index: 0, kind: input, shape index: {}, may-alias: {0,1}]
  %s1 = inlined_call_operand.vmem [shape: f32[2,32,256], index: 1, kind: input, shape index: {}, may-alias: {0,1}]
  %s2 = inlined_call_operand.vmem [shape: f32[4,32,32], index: 2, kind: input, shape index: {}]
  %s3 = inlined_call_operand.vmem [shape: f32[2,16,128], index: 3, kind: output, shape index: {}]
  %s4 = sld [smem:[#allocation0]]
  $region121: #{_cqt_forward.1} parent=0
    _
  %s6 = ssub.s32 1, %s4
  %s7 = scalar_select 0, %s6, %s4
  $region1: #{_cqt_forward.1} parent=0
    #allocation2 [shape = 'u8[32768]{0}', space=vmem, size = 0x8000, scoped, tag = 'input window, operand 0']
    #allocation3 [shape = 'u8[32768]{0}', space=vmem, size = 0x8000, scoped, tag = 'input window, operand 1']
    loop: start=0, step=1, limit=4
    $region2: #{_cqt_forward.1} parent=1 // loop_pre_header
      _
    $region3: #{_cqt_forward.1} parent=1 // loop_header
      %s9 = sphi 0, %s13
      %p10 = scmp.ge.s32.totalorder %s9, 4
      %s16 = sphi 0, %s28
      %s17 = sphi 0, %s24
      %s18 = sphi 0, %s16
      %s19 = sphi 0, %s17
      %s20 = sphi 0, %s18
      %s21 = sphi 0, %s19
      %s33 = sphi 0, %s35
      %s36 = sphi 0, %s33
      %s37 = sphi 0, %s36
      %s53 = sphi 0, %s37
      %s63 = sphi 0, %s65
      %s66 = sphi 0, %s63
      %s67 = sphi 0, %s66
      %s83 = sphi 0, %s67
      %s87 = sphi 0, %s87
      %s89 = sphi 0, %s87
      %s90 = sphi 0, %s89
      %s104 = sphi 0, %s90
      %s112 = sphi 0, %s114
      %s115 = sphi 0, %s112
      %s116 = sphi 0, %s115
      %s132 = sphi 0, %s116
    $region4: #{_cqt_forward.1} parent=1 // loop_header_branch
      %12 = sbr.rel (%p10) target = $region8
    $region5: #{_cqt_forward.1} parent=1 // loop_body
      %s14 = ssub.s32 %s9, 1
      %s15 = ssub.s32 %s9, 2
      %s22 = sadd.s32 1, %s17
      %p23 = scmp.ge.s32.totalorder %s22, 1
      %s24 = scalar_select %p23, 0, %s22
      %s25 = sadd.s32 1, %s16
      %s26 = scalar_select %p23, %s25, %s16
      %p27 = scmp.ge.s32.totalorder %s26, 2
      %s28 = scalar_select %p27, 0, %s26
      %s29 = ssub.s32 %s16, %s28
      %s30 = ssub.s32 %s17, %s24
      %s31 = sor.u32 %s29, %s30
      %p32 = scmp.eq.s32.totalorder %s31, 0
      %s34 = sadd.s32 %s33, 1
      %s35 = scalar_select %p32, %s33, %s34
      %p38 = pneg %p32
      %p39 = scmp.eq.s32.totalorder %s9, 1
      %p40 = por %p38, %p39
      %p41 = scmp.ne.s32.totalorder %s33, %s36
      %p42 = scmp.eq.s32.totalorder %s9, 0
      %p43 = por %p41, %p42
      %p44 = scmp.ne.s32.totalorder %s33, %s36
      %p45 = scmp.eq.s32.totalorder %s14, 1
      %p46 = por %p44, %p45
      %p47 = scmp.ne.s32.totalorder %s36, %s37
      %p48 = scmp.eq.s32.totalorder %s14, 0
      %p49 = por %p47, %p48
      %p50 = scmp.ne.s32.totalorder %s36, %s37
      %p51 = scmp.eq.s32.totalorder %s15, 1
      %p52 = por %p50, %p51
      %p54 = scmp.ne.s32.totalorder %s37, %s53
      %p55 = scmp.eq.s32.totalorder %s15, 0
      %p56 = por %p54, %p55
      %s57 = sadd.s32 %s17, 1
      %s58 = sadd.s32 %s24, 1
      %s59 = ssub.s32 %s16, %s28
      %s60 = ssub.s32 %s57, %s58
      %s61 = sor.u32 %s59, %s60
      %p62 = scmp.eq.s32.totalorder %s61, 0
      %s64 = sadd.s32 %s63, 1
      %s65 = scalar_select %p62, %s63, %s64
      %p68 = pneg %p62
      %p69 = scmp.eq.s32.totalorder %s9, 1
      %p70 = por %p68, %p69
      %p71 = scmp.ne.s32.totalorder %s63, %s66
      %p72 = scmp.eq.s32.totalorder %s9, 0
      %p73 = por %p71, %p72
      %p74 = scmp.ne.s32.totalorder %s63, %s66
      %p75 = scmp.eq.s32.totalorder %s14, 1
      %p76 = por %p74, %p75
      %p77 = scmp.ne.s32.totalorder %s66, %s67
      %p78 = scmp.eq.s32.totalorder %s14, 0
      %p79 = por %p77, %p78
      %p80 = scmp.ne.s32.totalorder %s66, %s67
      %p81 = scmp.eq.s32.totalorder %s15, 1
      %p82 = por %p80, %p81
      %p84 = scmp.ne.s32.totalorder %s67, %s83
      %p85 = scmp.eq.s32.totalorder %s15, 0
      %p86 = por %p84, %p85
      %s88 = sadd.s32 %s87, 1
      %p91 = scmp.eq.s32.totalorder %s9, 1
      %p92 = scmp.ne.s32.totalorder %s87, %s89
      %p93 = scmp.eq.s32.totalorder %s9, 0
      %p94 = por %p92, %p93
      %p95 = scmp.ne.s32.totalorder %s87, %s89
      %p96 = scmp.eq.s32.totalorder %s14, 1
      %p97 = por %p95, %p96
      %p98 = scmp.ne.s32.totalorder %s89, %s90
      %p99 = scmp.eq.s32.totalorder %s14, 0
      %p100 = por %p98, %p99
      %p101 = scmp.ne.s32.totalorder %s89, %s90
      %p102 = scmp.eq.s32.totalorder %s15, 1
      %p103 = por %p101, %p102
      %p105 = scmp.ne.s32.totalorder %s90, %s104
      %p106 = scmp.eq.s32.totalorder %s15, 0
      %p107 = por %p105, %p106
      %s108 = ssub.s32 %s16, %s28
      %s109 = ssub.s32 %s17, %s24
      %s110 = sor.u32 %s108, %s109
      %p111 = scmp.eq.s32.totalorder %s110, 0
      %s113 = sadd.s32 %s112, 1
      %s114 = scalar_select %p111, %s112, %s113
      %p117 = pneg %p111
      %p118 = scmp.eq.s32.totalorder %s9, 1
      %p119 = por %p117, %p118
      %p120 = scmp.ne.s32.totalorder %s112, %s115
      %p121 = scmp.eq.s32.totalorder %s9, 0
      %p122 = por %p120, %p121
      %p123 = scmp.ne.s32.totalorder %s112, %s115
      %p124 = scmp.eq.s32.totalorder %s14, 1
      %p125 = por %p123, %p124
      %p126 = scmp.ne.s32.totalorder %s115, %s116
      %p127 = scmp.eq.s32.totalorder %s14, 0
      %p128 = por %p126, %p127
      %p129 = scmp.ne.s32.totalorder %s115, %s116
      %p130 = scmp.eq.s32.totalorder %s15, 1
      %p131 = por %p129, %p130
      %p133 = scmp.ne.s32.totalorder %s116, %s132
      %p134 = scmp.eq.s32.totalorder %s15, 0
      %p135 = por %p133, %p134
      %p136 = scmp.le.s32.totalorder 1, %s9
      %p137 = scmp.lt.s32.totalorder %s9, 3
      %p138 = pnand %p136, %p137
      %p139 = pneg %p138
      // Predicated region
      $region9: #{_cqt_forward.1} parent=5 // pred_check
        _
      $region10: #{_cqt_forward.1} parent=5 // pred_check_branch
        %141 = sbr.rel (%p138) target = $region12
      $region11: #{_cqt_forward.1} parent=5 // pred_region
        %s142 = ssub.s32 %s9, 1
        // Predicated region
        $region13: #{_cqt_forward.1} parent=11 // pred_check
          %p143 = pneg %p100
        $region14: #{_cqt_forward.1} parent=11 // pred_check_branch
          %145 = sbr.rel (%p143) target = $region16
        $region15: #{_cqt_forward.1} parent=11 // pred_region
          _
        $region16: #{_cqt_forward.1} parent=11 // pred_fallthru
          _
      $region12: #{_cqt_forward.1} parent=5 // pred_fallthru
        _
      %p146 = scmp.lt.s32.totalorder %s9, 2
      // Predicated region
      $region17: #{_cqt_forward.1} parent=5 // pred_check
        %p147 = pneg %p146
      $region18: #{_cqt_forward.1} parent=5 // pred_check_branch
        %149 = sbr.rel (%p147) target = $region20
      $region19: #{_cqt_forward.1} parent=5 // pred_region
        // Predicated region
        $region21: #{_cqt_forward.1} parent=19 // pred_check
          %p150 = pneg %p43
        $region22: #{_cqt_forward.1} parent=19 // pred_check_branch
          %152 = sbr.rel (%p150) target = $region24
        $region23: #{_cqt_forward.1} parent=19 // pred_region
          %s153 = sand.u32 %s33, 1
          %s154 = sand.u32 %s33, 1
          %s155 = smul.addr %s154, 32
          %s156 = scalar_lea.vmem [#allocation2], %s155
          %s157 = smul.addr %s16, 8
          %s158 = sadd.s32 %s17, %s157
          %s159 = smul.addr %s158, 8
          %s160 = scalar_lea.vmem %s0, %s159
          // Predicated region
          $region25: #{_cqt_forward.1} parent=23 // pred_check
            _
          $region26: #{_cqt_forward.1} parent=23 // pred_check_branch
            %162 = sbr.rel (0) target = $region28
          $region27: #{_cqt_forward.1} parent=23 // pred_region
            // Predicated region
            $region29: #{_cqt_forward.1} parent=27 // pred_check
              _
            $region30: #{_cqt_forward.1} parent=27 // pred_check_branch
              %164 = sbr.rel (0) target = $region32
            $region31: #{_cqt_forward.1} parent=27 // pred_region
              // Predicated region
              $region44: #{_cqt_forward.1} parent=31 // pred_check
                _
              $region45: #{_cqt_forward.1} parent=31 // pred_check_branch
                %186 = sbr.rel (0) target = $region47
              $region46: #{_cqt_forward.1} parent=31 // pred_region
                loop: start=0, step=1, limit=1
                $region48: #{_cqt_forward.1} parent=46 // loop_pre_header
                  _
                $region49: #{_cqt_forward.1} parent=46 // loop_header
                  %s188 = sphi 0, %s192
                  %p189 = scmp.ge.s32.totalorder %s188, 1
                  %s193 = sphi %s160, %s160
                  %s194 = sphi %s156, %s156
                $region50: #{_cqt_forward.1} parent=46 // loop_header_branch
                  %191 = sbr.rel (%p189) target = $region54
                $region51: #{_cqt_forward.1} parent=46 // loop_body
                  %v195 = vld [vmem:[%s193] sm:$0xff]
                  %196 = vst [vmem:[%s194] sm:$0xff] %v195
                  %v197 = vld [vmem:[%s193 + $0x10] sm:$0xff]
                  %198 = vst [vmem:[%s194 + $0x8] sm:$0xff] %v197
                  %v199 = vld [vmem:[%s193 + $0x20] sm:$0xff]
                  %200 = vst [vmem:[%s194 + $0x10] sm:$0xff] %v199
                  %v201 = vld [vmem:[%s193 + $0x30] sm:$0xff]
                  %202 = vst [vmem:[%s194 + $0x18] sm:$0xff] %v201
                $region52: #{_cqt_forward.1} parent=46 // loop_footer
                  %s192 = sadd.s32 1, %s188
                $region53: #{_cqt_forward.1} parent=46 // loop_footer_branch
                  %187 = sbr.rel target = $region49
                $region54: #{_cqt_forward.1} parent=46 // loop_exit
                  _
              $region47: #{_cqt_forward.1} parent=31 // pred_fallthru
                _
              // Predicated region
              $region55: #{_cqt_forward.1} parent=31 // pred_check
                _
              $region56: #{_cqt_forward.1} parent=31 // pred_check_branch
                %204 = sbr.rel target = $region58
              $region57: #{_cqt_forward.1} parent=31 // pred_region
                _
              $region58: #{_cqt_forward.1} parent=31 // pred_fallthru
                _
            $region32: #{_cqt_forward.1} parent=27 // pred_fallthru
              _
            // Predicated region
            $region33: #{_cqt_forward.1} parent=27 // pred_check
              _
            $region34: #{_cqt_forward.1} parent=27 // pred_check_branch
              %166 = sbr.rel target = $region36
            $region35: #{_cqt_forward.1} parent=27 // pred_region
              %s168 = ssub.s32 256, 1
              loop: start=0, step=1, limit=1
              $region37: #{_cqt_forward.1} parent=35 // loop_pre_header
                _
              $region38: #{_cqt_forward.1} parent=35 // loop_header
                %s170 = sphi 0, %s174
                %p171 = scmp.ge.s32.totalorder %s170, 1
                %s175 = sphi %s160, %s160
                %s176 = sphi %s156, %s156
              $region39: #{_cqt_forward.1} parent=35 // loop_header_branch
                %173 = sbr.rel (%p171) target = $region43
              $region40: #{_cqt_forward.1} parent=35 // loop_body
                %v177 = vld [vmem:[%s175] sm:%s168]
                %178 = vst [vmem:[%s176] sm:%s168] %v177
                %v179 = vld [vmem:[%s175 + $0x10] sm:%s168]
                %180 = vst [vmem:[%s176 + $0x8] sm:%s168] %v179
                %v181 = vld [vmem:[%s175 + $0x20] sm:%s168]
                %182 = vst [vmem:[%s176 + $0x10] sm:%s168] %v181
                %v183 = vld [vmem:[%s175 + $0x30] sm:%s168]
                %184 = vst [vmem:[%s176 + $0x18] sm:%s168] %v183
              $region41: #{_cqt_forward.1} parent=35 // loop_footer
                %s174 = sadd.s32 1, %s170
              $region42: #{_cqt_forward.1} parent=35 // loop_footer_branch
                %169 = sbr.rel target = $region38
              $region43: #{_cqt_forward.1} parent=35 // loop_exit
                _
            $region36: #{_cqt_forward.1} parent=27 // pred_fallthru
              _
          $region28: #{_cqt_forward.1} parent=23 // pred_fallthru
            _
          %205 = vnop
        $region24: #{_cqt_forward.1} parent=19 // pred_fallthru
          _
        // Predicated region
        $region59: #{_cqt_forward.1} parent=19 // pred_check
          %p206 = pneg %p73
        $region60: #{_cqt_forward.1} parent=19 // pred_check_branch
          %208 = sbr.rel (%p206) target = $region62
        $region61: #{_cqt_forward.1} parent=19 // pred_region
          %s209 = sand.u32 %s63, 1
          %s210 = sand.u32 %s63, 1
          %s211 = smul.addr %s210, 32
          %s212 = scalar_lea.vmem [#allocation3], %s211
          %s213 = sadd.s32 %s17, 1
          %s214 = smul.addr %s16, 8
          %s215 = sadd.s32 %s213, %s214
          %s216 = smul.addr %s215, 8
          %s217 = scalar_lea.vmem %s1, %s216
          // Predicated region
          $region63: #{_cqt_forward.1} parent=61 // pred_check
            _
          $region64: #{_cqt_forward.1} parent=61 // pred_check_branch
            %219 = sbr.rel (0) target = $region66
          $region65: #{_cqt_forward.1} parent=61 // pred_region
            // Predicated region
            $region67: #{_cqt_forward.1} parent=65 // pred_check
              _
            $region68: #{_cqt_forward.1} parent=65 // pred_check_branch
              %221 = sbr.rel (0) target = $region70
            $region69: #{_cqt_forward.1} parent=65 // pred_region
              // Predicated region
              $region82: #{_cqt_forward.1} parent=69 // pred_check
                _
              $region83: #{_cqt_forward.1} parent=69 // pred_check_branch
                %243 = sbr.rel (0) target = $region85
              $region84: #{_cqt_forward.1} parent=69 // pred_region
                loop: start=0, step=1, limit=1
                $region86: #{_cqt_forward.1} parent=84 // loop_pre_header
                  _
                $region87: #{_cqt_forward.1} parent=84 // loop_header
                  %s245 = sphi 0, %s249
                  %p246 = scmp.ge.s32.totalorder %s245, 1
                  %s250 = sphi %s217, %s217
                  %s251 = sphi %s212, %s212
                $region88: #{_cqt_forward.1} parent=84 // loop_header_branch
                  %248 = sbr.rel (%p246) target = $region92
                $region89: #{_cqt_forward.1} parent=84 // loop_body
                  %v252 = vld [vmem:[%s250] sm:$0xff]
                  %253 = vst [vmem:[%s251] sm:$0xff] %v252
                  %v254 = vld [vmem:[%s250 + $0x10] sm:$0xff]
                  %255 = vst [vmem:[%s251 + $0x8] sm:$0xff] %v254
                  %v256 = vld [vmem:[%s250 + $0x20] sm:$0xff]
                  %257 = vst [vmem:[%s251 + $0x10] sm:$0xff] %v256
                  %v258 = vld [vmem:[%s250 + $0x30] sm:$0xff]
                  %259 = vst [vmem:[%s251 + $0x18] sm:$0xff] %v258
                $region90: #{_cqt_forward.1} parent=84 // loop_footer
                  %s249 = sadd.s32 1, %s245
                $region91: #{_cqt_forward.1} parent=84 // loop_footer_branch
                  %244 = sbr.rel target = $region87
                $region92: #{_cqt_forward.1} parent=84 // loop_exit
                  _
              $region85: #{_cqt_forward.1} parent=69 // pred_fallthru
                _
              // Predicated region
              $region93: #{_cqt_forward.1} parent=69 // pred_check
                _
              $region94: #{_cqt_forward.1} parent=69 // pred_check_branch
                %261 = sbr.rel target = $region96
              $region95: #{_cqt_forward.1} parent=69 // pred_region
                _
              $region96: #{_cqt_forward.1} parent=69 // pred_fallthru
                _
            $region70: #{_cqt_forward.1} parent=65 // pred_fallthru
              _
            // Predicated region
            $region71: #{_cqt_forward.1} parent=65 // pred_check
              _
            $region72: #{_cqt_forward.1} parent=65 // pred_check_branch
              %223 = sbr.rel target = $region74
            $region73: #{_cqt_forward.1} parent=65 // pred_region
              %s225 = ssub.s32 256, 1
              loop: start=0, step=1, limit=1
              $region75: #{_cqt_forward.1} parent=73 // loop_pre_header
                _
              $region76: #{_cqt_forward.1} parent=73 // loop_header
                %s227 = sphi 0, %s231
                %p228 = scmp.ge.s32.totalorder %s227, 1
                %s232 = sphi %s217, %s217
                %s233 = sphi %s212, %s212
              $region77: #{_cqt_forward.1} parent=73 // loop_header_branch
                %230 = sbr.rel (%p228) target = $region81
              $region78: #{_cqt_forward.1} parent=73 // loop_body
                %v234 = vld [vmem:[%s232] sm:%s225]
                %235 = vst [vmem:[%s233] sm:%s225] %v234
                %v236 = vld [vmem:[%s232 + $0x10] sm:%s225]
                %237 = vst [vmem:[%s233 + $0x8] sm:%s225] %v236
                %v238 = vld [vmem:[%s232 + $0x20] sm:%s225]
                %239 = vst [vmem:[%s233 + $0x10] sm:%s225] %v238
                %v240 = vld [vmem:[%s232 + $0x30] sm:%s225]
                %241 = vst [vmem:[%s233 + $0x18] sm:%s225] %v240
              $region79: #{_cqt_forward.1} parent=73 // loop_footer
                %s231 = sadd.s32 1, %s227
              $region80: #{_cqt_forward.1} parent=73 // loop_footer_branch
                %226 = sbr.rel target = $region76
              $region81: #{_cqt_forward.1} parent=73 // loop_exit
                _
            $region74: #{_cqt_forward.1} parent=65 // pred_fallthru
              _
          $region66: #{_cqt_forward.1} parent=61 // pred_fallthru
            _
          %262 = vnop
        $region62: #{_cqt_forward.1} parent=19 // pred_fallthru
          _
      $region20: #{_cqt_forward.1} parent=5 // pred_fallthru
        _
      %p263 = scmp.le.s32.totalorder 1, %s9
      %p264 = scmp.lt.s32.totalorder %s9, 3
      %p265 = pnand %p263, %p264
      %p266 = pneg %p265
      // Predicated region
      $region97: #{_cqt_forward.1} parent=5 // pred_check
        _
      $region98: #{_cqt_forward.1} parent=5 // pred_check_branch
        %268 = sbr.rel (%p265) target = $region100
      $region99: #{_cqt_forward.1} parent=5 // pred_region
        %s269 = ssub.s32 %s9, 1
        %s270 = sand.u32 %s36, 1
        %s271 = sand.u32 %s36, 1
        %s272 = smul.addr %s271, 32
        %s273 = scalar_lea.vmem [#allocation2], %s272
        // Predicated region
        $region101: #{_cqt_forward.1} parent=99 // pred_check
          %p274 = pneg %p49
        $region102: #{_cqt_forward.1} parent=99 // pred_check_branch
          %276 = sbr.rel (%p274) target = $region104
        $region103: #{_cqt_forward.1} parent=99 // pred_region
          _
        $region104: #{_cqt_forward.1} parent=99 // pred_fallthru
          _
        %s277 = sand.u32 %s66, 1
        %s278 = sand.u32 %s66, 1
        %s279 = smul.addr %s278, 32
        %s280 = scalar_lea.vmem [#allocation3], %s279
        // Predicated region
        $region105: #{_cqt_forward.1} parent=99 // pred_check
          %p281 = pneg %p79
        $region106: #{_cqt_forward.1} parent=99 // pred_check_branch
          %283 = sbr.rel (%p281) target = $region108
        $region107: #{_cqt_forward.1} parent=99 // pred_region
          _
        $region108: #{_cqt_forward.1} parent=99 // pred_fallthru
          _
        %s284 = sand.u32 %s36, 1
        %s285 = sand.u32 %s36, 1
        %s286 = smul.addr %s285, 32
        %s287 = scalar_lea.vmem [#allocation2], %s286
        %p288 = pneg %p49
        %p289 = pneg %p46
        %s290 = sand.u32 %s66, 1
        %s291 = sand.u32 %s66, 1
        %s292 = smul.addr %s291, 32
        %s293 = scalar_lea.vmem [#allocation3], %s292
        %p294 = pneg %p79
        %p295 = pneg %p76
        %p296 = pneg %p100
        %p297 = pneg %p97
        %p298 = pneg %p128
        %p299 = pneg %p125
        %p300 = scmp.lt.s32.totalorder %s18, 1
        %s301 = scalar_select %p300, %s18, 1
        %p302 = scmp.lt.s32.totalorder %s19, 0
        %s303 = scalar_select %p302, %s19, 0
        %s304 = smul.addr %s301, 2
        %s305 = sadd.s32 %s303, %s304
        %s306 = smul.addr %s305, 8
        %s307 = scalar_lea.vmem %s3, %s306
        %s308 = sadd.s32 %s19, 1
        %p309 = scmp.lt.s32.totalorder %s18, 1
        %s310 = scalar_select %p309, %s18, 1
        %p311 = scmp.lt.s32.totalorder %s19, 0
        %s312 = scalar_select %p311, %s19, 0
        %s313 = smul.addr %s310, 2
        %s314 = sadd.s32 %s312, %s313
        %s315 = smul.addr %s314, 8
        %s316 = scalar_lea.vmem %s3, %s315
        %v317 = vld [vmem:[%s273] sm:$0xff]
        %v318 = vld [vmem:[%s273 + $0x8] sm:$0xff]
        %v319 = vld [vmem:[%s273 + $0x10] sm:$0xff]
        %v320 = vld [vmem:[%s273 + $0x18] sm:$0xff]
        %v321 = vld [vmem:[%s2] sm:$0xff]
        %v322 = vld [vmem:[%s2 + $0x8] sm:$0xff]
        %v323 = vld [vmem:[%s2 + $0x10] sm:$0xff]
        %v324 = vld [vmem:[%s2 + $0x18] sm:$0xff]
        %v325 = vld [vmem:[%s280] sm:$0xff]
        %v326 = vld [vmem:[%s280 + $0x8] sm:$0xff]
        %v327 = vld [vmem:[%s280 + $0x10] sm:$0xff]
        %v328 = vld [vmem:[%s280 + $0x18] sm:$0xff]
        %329 = vrot.lane.b32.xlu0 %v317, 127
        %v330 = vpop.permute.xlu0 %329
        %331 = vrot.lane.b32.xlu0 %v318, 127
        %v332 = vpop.permute.xlu0 %331
        %333 = vrot.lane.b32.xlu0 %v319, 127
        %v334 = vpop.permute.xlu0 %333
        %335 = vrot.lane.b32.xlu0 %v320, 127
        %v336 = vpop.permute.xlu0 %335
        %337 = vrot.lane.b32.xlu0 %v325, 127
        %v338 = vpop.permute.xlu0 %337
        %339 = vrot.lane.b32.xlu0 %v326, 127
        %v340 = vpop.permute.xlu0 %339
        %341 = vrot.lane.b32.xlu0 %v327, 127
        %v342 = vpop.permute.xlu0 %341
        %343 = vrot.lane.b32.xlu0 %v328, 127
        %v344 = vpop.permute.xlu0 %343
        %v345 = vlaneseq
        %v346 = vand.u32 %v345, 127
        %vm347 = vcmp.lt.s32.totalorder %v346, 127
        %v348 = vsel %vm347, %v330, %v338
        %v349 = vsel %vm347, %v332, %v340
        %v350 = vsel %vm347, %v334, %v342
        %v351 = vsel %vm347, %v336, %v344
        %s352 = scalar_lea.vmem %s2, 32
        %v353 = vld [vmem:[%s352] sm:$0xff]
        %v354 = vld [vmem:[%s352 + $0x8] sm:$0xff]
        %v355 = vld [vmem:[%s352 + $0x10] sm:$0xff]
        %v356 = vld [vmem:[%s352 + $0x18] sm:$0xff]
        %vm357 = vcmask 261120
        %v359 = vsel %vm357, %v353, 0
        %v362 = vsel %vm357, %v354, 0
        %v365 = vsel %vm357, %v355, 0
        %v368 = vsel %vm357, %v356, 0
        %370 = vmatpush.msra.mxu0 0.0
        %371 = vmatpush.msra.mxu0 0.0
        %372 = vmatpush.msra.mxu0 0.0
        %373 = vmatpush.msra.mxu0 0.0
        %374 = vmatpush.msra.mxu0 0.0
        %375 = vmatpush.msra.mxu0 0.0
        %376 = vmatpush.msra.mxu0 0.0
        %377 = vmatpush.msra.mxu0 0.0
        %378 = vmatpush.msra.mxu0 0.0
        %379 = vmatpush.msra.mxu0 0.0
        %380 = vmatpush.msra.mxu0 0.0
        %381 = vmatpush.msra.mxu0 0.0
        %382 = vmatpush.msra.mxu0 %v351
        %383 = vmatpush.msra.mxu0 %v350
        %384 = vmatpush.msra.mxu0 %v349
        %385 = vmatpush.msra.mxu0 %v348
        %386 = vmatmul.f32.gmra.mxu0 %v359
        %v387 = vpop.f32.mrf.mxu0
        %v388 = vadd.f32 0.0, %v387
        %389 = vmatmul.f32.gmra.mxu0 %v362
        %v390 = vpop.f32.mrf.mxu0
        %v391 = vadd.f32 0.0, %v390
        %392 = vmatmul.f32.gmra.mxu0 %v365
        %v393 = vpop.f32.mrf.mxu0
        %v394 = vadd.f32 0.0, %v393
        %395 = vmatmul.f32.gmra.mxu0 %v368
        %v396 = vpop.f32.mrf.mxu0
        %v397 = vadd.f32 0.0, %v396
        %398 = vdwg.mxu0
        %v400 = vsel %vm357, %v321, 0
        %v403 = vsel %vm357, %v322, 0
        %v406 = vsel %vm357, %v323, 0
        %v409 = vsel %vm357, %v324, 0
        %411 = vmatpush.msra.mxu0 0.0
        %412 = vmatpush.msra.mxu0 0.0
        %413 = vmatpush.msra.mxu0 0.0
        %414 = vmatpush.msra.mxu0 0.0
        %415 = vmatpush.msra.mxu0 0.0
        %416 = vmatpush.msra.mxu0 0.0
        %417 = vmatpush.msra.mxu0 0.0
        %418 = vmatpush.msra.mxu0 0.0
        %419 = vmatpush.msra.mxu0 0.0
        %420 = vmatpush.msra.mxu0 0.0
        %421 = vmatpush.msra.mxu0 0.0
        %422 = vmatpush.msra.mxu0 0.0
        %423 = vmatpush.msra.mxu0 %v320
        %424 = vmatpush.msra.mxu0 %v319
        %425 = vmatpush.msra.mxu0 %v318
        %426 = vmatpush.msra.mxu0 %v317
        %427 = vmatmul.f32.gmra.mxu0 %v400
        %v428 = vpop.f32.mrf.mxu0
        %v429 = vadd.f32 %v388, %v428
        %430 = vmatmul.f32.gmra.mxu0 %v403
        %v431 = vpop.f32.mrf.mxu0
        %v432 = vadd.f32 %v391, %v431
        %433 = vmatmul.f32.gmra.mxu0 %v406
        %v434 = vpop.f32.mrf.mxu0
        %v435 = vadd.f32 %v394, %v434
        %436 = vmatmul.f32.gmra.mxu0 %v409
        %v437 = vpop.f32.mrf.mxu0
        %v438 = vadd.f32 %v397, %v437
        %439 = vdwg.mxu0
        %440 = vrot.lane.b32.xlu0 %v317, 126
        %v441 = vpop.permute.xlu0 %440
        %442 = vrot.lane.b32.xlu0 %v318, 126
        %v443 = vpop.permute.xlu0 %442
        %444 = vrot.lane.b32.xlu0 %v319, 126
        %v445 = vpop.permute.xlu0 %444
        %446 = vrot.lane.b32.xlu0 %v320, 126
        %v447 = vpop.permute.xlu0 %446
        %448 = vrot.lane.b32.xlu0 %v325, 126
        %v449 = vpop.permute.xlu0 %448
        %450 = vrot.lane.b32.xlu0 %v326, 126
        %v451 = vpop.permute.xlu0 %450
        %452 = vrot.lane.b32.xlu0 %v327, 126
        %v453 = vpop.permute.xlu0 %452
        %454 = vrot.lane.b32.xlu0 %v328, 126
        %v455 = vpop.permute.xlu0 %454
        %vm456 = vcmp.lt.s32.totalorder %v346, 126
        %v457 = vsel %vm456, %v441, %v449
        %v458 = vsel %vm456, %v443, %v451
        %v459 = vsel %vm456, %v445, %v453
        %v460 = vsel %vm456, %v447, %v455
        %s461 = scalar_lea.vmem %s2, 64
        %v462 = vld [vmem:[%s461] sm:$0xff]
        %v463 = vld [vmem:[%s461 + $0x8] sm:$0xff]
        %v464 = vld [vmem:[%s461 + $0x10] sm:$0xff]
        %v465 = vld [vmem:[%s461 + $0x18] sm:$0xff]
        %v467 = vsel %vm357, %v462, 0
        %v470 = vsel %vm357, %v463, 0
        %v473 = vsel %vm357, %v464, 0
        %v476 = vsel %vm357, %v465, 0
        %478 = vmatpush.msra.mxu0 0.0
        %479 = vmatpush.msra.mxu0 0.0
        %480 = vmatpush.msra.mxu0 0.0
        %481 = vmatpush.msra.mxu0 0.0
        %482 = vmatpush.msra.mxu0 0.0
        %483 = vmatpush.msra.mxu0 0.0
        %484 = vmatpush.msra.mxu0 0.0
        %485 = vmatpush.msra.mxu0 0.0
        %486 = vmatpush.msra.mxu0 0.0
        %487 = vmatpush.msra.mxu0 0.0
        %488 = vmatpush.msra.mxu0 0.0
        %489 = vmatpush.msra.mxu0 0.0
        %490 = vmatpush.msra.mxu0 %v460
        %491 = vmatpush.msra.mxu0 %v459
        %492 = vmatpush.msra.mxu0 %v458
        %493 = vmatpush.msra.mxu0 %v457
        %494 = vmatmul.f32.gmra.mxu0 %v467
        %v495 = vpop.f32.mrf.mxu0
        %v496 = vadd.f32 0.0, %v495
        %497 = vmatmul.f32.gmra.mxu0 %v470
        %v498 = vpop.f32.mrf.mxu0
        %v499 = vadd.f32 0.0, %v498
        %500 = vmatmul.f32.gmra.mxu0 %v473
        %v501 = vpop.f32.mrf.mxu0
        %v502 = vadd.f32 0.0, %v501
        %503 = vmatmul.f32.gmra.mxu0 %v476
        %v504 = vpop.f32.mrf.mxu0
        %v505 = vadd.f32 0.0, %v504
        %506 = vdwg.mxu0
        %v507 = vadd.f32 %v429, %v496
        %v508 = vadd.f32 %v432, %v499
        %v509 = vadd.f32 %v435, %v502
        %v510 = vadd.f32 %v438, %v505
        %511 = vrot.lane.b32.xlu0 %v317, 125
        %v512 = vpop.permute.xlu0 %511
        %513 = vrot.lane.b32.xlu0 %v318, 125
        %v514 = vpop.permute.xlu0 %513
        %515 = vrot.lane.b32.xlu0 %v319, 125
        %v516 = vpop.permute.xlu0 %515
        %517 = vrot.lane.b32.xlu0 %v320, 125
        %v518 = vpop.permute.xlu0 %517
        %519 = vrot.lane.b32.xlu0 %v325, 125
        %v520 = vpop.permute.xlu0 %519
        %521 = vrot.lane.b32.xlu0 %v326, 125
        %v522 = vpop.permute.xlu0 %521
        %523 = vrot.lane.b32.xlu0 %v327, 125
        %v524 = vpop.permute.xlu0 %523
        %525 = vrot.lane.b32.xlu0 %v328, 125
        %v526 = vpop.permute.xlu0 %525
        %vm527 = vcmp.lt.s32.totalorder %v346, 125
        %v528 = vsel %vm527, %v512, %v520
        %v529 = vsel %vm527, %v514, %v522
        %v530 = vsel %vm527, %v516, %v524
        %v531 = vsel %vm527, %v518, %v526
        %s532 = scalar_lea.vmem %s2, 96
        %v533 = vld [vmem:[%s532] sm:$0xff]
        %v534 = vld [vmem:[%s532 + $0x8] sm:$0xff]
        %v535 = vld [vmem:[%s532 + $0x10] sm:$0xff]
        %v536 = vld [vmem:[%s532 + $0x18] sm:$0xff]
        %v538 = vsel %vm357, %v533, 0
        %v541 = vsel %vm357, %v534, 0
        %v544 = vsel %vm357, %v535, 0
        %v547 = vsel %vm357, %v536, 0
        %549 = vmatpush.msra.mxu0 0.0
        %550 = vmatpush.msra.mxu0 0.0
        %551 = vmatpush.msra.mxu0 0.0
        %552 = vmatpush.msra.mxu0 0.0
        %553 = vmatpush.msra.mxu0 0.0
        %554 = vmatpush.msra.mxu0 0.0
        %555 = vmatpush.msra.mxu0 0.0
        %556 = vmatpush.msra.mxu0 0.0
        %557 = vmatpush.msra.mxu0 0.0
        %558 = vmatpush.msra.mxu0 0.0
        %559 = vmatpush.msra.mxu0 0.0
        %560 = vmatpush.msra.mxu0 0.0
        %561 = vmatpush.msra.mxu0 %v531
        %562 = vmatpush.msra.mxu0 %v530
        %563 = vmatpush.msra.mxu0 %v529
        %564 = vmatpush.msra.mxu0 %v528
        %565 = vmatmul.f32.gmra.mxu0 %v538
        %v566 = vpop.f32.mrf.mxu0
        %v567 = vadd.f32 0.0, %v566
        %568 = vmatmul.f32.gmra.mxu0 %v541
        %v569 = vpop.f32.mrf.mxu0
        %v570 = vadd.f32 0.0, %v569
        %571 = vmatmul.f32.gmra.mxu0 %v544
        %v572 = vpop.f32.mrf.mxu0
        %v573 = vadd.f32 0.0, %v572
        %574 = vmatmul.f32.gmra.mxu0 %v547
        %v575 = vpop.f32.mrf.mxu0
        %v576 = vadd.f32 0.0, %v575
        %577 = vdwg.mxu0
        %v578 = vadd.f32 %v507, %v567
        %v579 = vadd.f32 %v508, %v570
        %v580 = vadd.f32 %v509, %v573
        %v581 = vadd.f32 %v510, %v576
        %v582 = vmul.f32 %v578, %v578
        %v583 = vmul.f32 %v579, %v579
        %v584 = vmul.f32 %v580, %v580
        %v585 = vmul.f32 %v581, %v581
        %v586 = vadd.f32 %v582, %v584
        %v587 = vadd.f32 %v583, %v585
        %v588 = vrsqrt.pop %v586
        %v589 = vmul.f32 %v588, %v586
        %v590 = vmul.f32 %v589, %v588
        %v591 = vmul.f32 0.5, %v590
        %v592 = vsub.f32 1.5, %v591
        %v593 = vmul.f32 %v588, %v592
        %v594 = vmul.f32 %v586, %v593
        %vm595 = vcmp.eq.f32.partialorder %v586, inf
        %v596 = vsel %vm595, %v586, %v594
        %vm597 = vcmp.eq.f32.partialorder %v586, 0.0
        %v598 = vand.u32 %v586, 2147483648
        %v599 = vsel %vm597, %v598, %v596
        %v600 = vrsqrt.pop %v587
        %v601 = vmul.f32 %v600, %v587
        %v602 = vmul.f32 %v601, %v600
        %v603 = vmul.f32 0.5, %v602
        %v604 = vsub.f32 1.5, %v603
        %v605 = vmul.f32 %v600, %v604
        %v606 = vmul.f32 %v587, %v605
        %vm607 = vcmp.eq.f32.partialorder %v587, inf
        %v608 = vsel %vm607, %v587, %v606
        %vm609 = vcmp.eq.f32.partialorder %v587, 0.0
        %v610 = vand.u32 %v587, 2147483648
        %v611 = vsel %vm609, %v610, %v608
        %612 = vst [vmem:[%s316] sm:$0xff] %v599
        %613 = vst [vmem:[%s316 + $0x8] sm:$0xff] %v611
        %p614 = scmp.lt.s32.totalorder %s18, 1
        %s615 = scalar_select %p614, %s18, 1
        %p616 = scmp.lt.s32.totalorder %s19, 0
        %s617 = scalar_select %p616, %s19, 0
        %s618 = smul.addr %s615, 2
        %s619 = sadd.s32 %s617, %s618
        %s620 = smul.addr %s619, 8
        %s621 = scalar_lea.vmem %s3, %s620
        // Predicated region
        $region109: #{_cqt_forward.1} parent=99 // pred_check
          %p622 = pneg %p125
        $region110: #{_cqt_forward.1} parent=99 // pred_check_branch
          %624 = sbr.rel (%p622) target = $region112
        $region111: #{_cqt_forward.1} parent=99 // pred_region
          _
        $region112: #{_cqt_forward.1} parent=99 // pred_fallthru
          _
      $region100: #{_cqt_forward.1} parent=5 // pred_fallthru
        _
      %p625 = scmp.le.s32.totalorder 2, %s9
      // Predicated region
      $region113: #{_cqt_forward.1} parent=5 // pred_check
        %p626 = pneg %p625
      $region114: #{_cqt_forward.1} parent=5 // pred_check_branch
        %628 = sbr.rel (%p626) target = $region116
      $region115: #{_cqt_forward.1} parent=5 // pred_region
        %s629 = ssub.s32 %s9, 2
        // Predicated region
        $region117: #{_cqt_forward.1} parent=115 // pred_check
          %p630 = pneg %p131
        $region118: #{_cqt_forward.1} parent=115 // pred_check_branch
          %632 = sbr.rel (%p630) target = $region120
        $region119: #{_cqt_forward.1} parent=115 // pred_region
          %p633 = scmp.lt.s32.totalorder %s20, 1
          %s634 = scalar_select %p633, %s20, 1
          %p635 = scmp.lt.s32.totalorder %s21, 0
          %s636 = scalar_select %p635, %s21, 0
          %s637 = smul.addr %s634, 2
          %s638 = sadd.s32 %s636, %s637
          %s639 = smul.addr %s638, 8
          %s640 = scalar_lea.vmem %s3, %s639
        $region120: #{_cqt_forward.1} parent=115 // pred_fallthru
          _
      $region116: #{_cqt_forward.1} parent=5 // pred_fallthru
        _
    $region6: #{_cqt_forward.1} parent=1 // loop_footer
      %s13 = sadd.s32 1, %s9
    $region7: #{_cqt_forward.1} parent=1 // loop_footer_branch
      %8 = sbr.rel target = $region3
    $region8: #{_cqt_forward.1} parent=1 // loop_exit
      _

</llo_original>
